<compile_context>
chip_gen: v7x
topology: tpu7x:2x2x1
jax: 0.10.0
libtpu: 0.0.40
codegen_flags: <defaults>
</compile_context>

<pallas_src>
import math

import jax
import jax.numpy as jnp
from jax.experimental import pallas as pl
from jax.experimental.pallas import tpu as pltpu


def _round_up(x, m):
    return ((x + m - 1) // m) * m


def _gelu_exact(x):
    # PyTorch nn.GELU() default is the exact erf formulation.
    return 0.5 * x * (1.0 + jax.lax.erf(x * (1.0 / math.sqrt(2.0))))


def _param_offsets(dims):
    """Flat offsets of (W, b) per layer when packed as
    [W0.ravel(), b0, W1.ravel(), b1, ...] with W in PyTorch [out, in] row-major."""
    offs = []
    o = 0
    for l in range(len(dims) - 1):
        din, dout = dims[l], dims[l + 1]
        w_off = o
        b_off = o + din * dout
        offs.append((w_off, b_off))
        o = b_off + dout
    return offs, o


def _make_mlp_kernel(dims):
    n_layers = len(dims) - 1
    offsets, _ = _param_offsets(dims)

    def kernel(params_ref, x_ref, o_ref):
        # params_ref: (P,) f32 in SMEM (all weights + biases, packed)
        # x_ref:      (in_dim, tm) VMEM block  -- features on sublanes, batch on lanes
        # o_ref:      (out_dim, tm) VMEM block -- lane-dense output
        h = x_ref[...].astype(jnp.float32)
        acts = [h[i:i + 1, :] for i in range(dims[0])]  # list of (1, tm) rows

        for l in range(n_layers):
            din, dout = dims[l], dims[l + 1]
            w_off, b_off = offsets[l]
            new_acts = []
            for j in range(dout):
                # Unrolled VPU broadcast-FMA: acc = sum_i W[j, i] * act_i + b[j]
                acc = params_ref[w_off + j * din] * acts[0]
                for i in range(1, din):
                    acc = acc + params_ref[w_off + j * din + i] * acts[i]
                acc = acc + params_ref[b_off + j]
                if l < n_layers - 1:
                    acc = _gelu_exact(acc)
                new_acts.append(acc)
            acts = new_acts

        for j in range(dims[-1]):
            o_ref[j:j + 1, :] = acts[j].astype(o_ref.dtype)

    return kernel


def mlp_forward(x, params, *, tm=1024):
    """x: [B, input_dim]; params: list of (W[out, in], b[out]) in PyTorch layout."""
    B, in_dim = x.shape
    dims = tuple([in_dim] + [w.shape[0] for (w, _) in params])
    out_dim = dims[-1]

    # Pack every weight/bias into a single flat f32 vector (lives in SMEM).
    flat = []
    for (w, b) in params:
        flat.append(w.reshape(-1).astype(jnp.float32))
        flat.append(b.reshape(-1).astype(jnp.float32))
    params_flat = jnp.concatenate(flat)

    # Lane-dense layout: batch on the 128-lane axis, padded to a tile multiple.
    tm_eff = max(128, min(_round_up(tm, 128), _round_up(B, 128)))
    Bp = _round_up(B, tm_eff)
    x_t = jnp.pad(x.T.astype(jnp.float32), ((0, 0), (0, Bp - B)))

    grid = (Bp // tm_eff,)
    kernel = _make_mlp_kernel(dims)

    out_t = pl.pallas_call(
        kernel,
        out_shape=jax.ShapeDtypeStruct((out_dim, Bp), jnp.float32),
        grid=grid,
        in_specs=[
            # Packed parameters: one small un-tiled SMEM input (no streaming).
            pl.BlockSpec(memory_space=pltpu.MemorySpace.SMEM),
            # Activations: lane-dense batch tile.
            pl.BlockSpec((in_dim, tm_eff), lambda i: (0, i)),
        ],
        out_specs=pl.BlockSpec((out_dim, tm_eff), lambda i: (0, i)),
        compiler_params=pltpu.CompilerParams(
            dimension_semantics=("parallel",)),
    )(params_flat, x_t)

    # Drop tail padding and return in the module's [B, out_dim] layout.
    return out_t[:, :B].T.astype(x.dtype)


def init_params(key, input_dim=2, hidden_layers=(5, 5, 5), output_dim=1):
    """Kaiming-normal (fan_in, linear gain => std = 1/sqrt(fan_in)), zero bias.
    Weights stored in PyTorch [out, in] layout."""
    dims = [input_dim] + list(hidden_layers) + [output_dim]
    params = []
    for i in range(len(dims) - 1):
        key, sub = jax.random.split(key)
        fan_in, fan_out = dims[i], dims[i + 1]
        std = 1.0 / math.sqrt(fan_in)
        w = std * jax.random.normal(sub, (fan_out, fan_in), dtype=jnp.float32)
        b = jnp.zeros((fan_out,), dtype=jnp.float32)
        params.append((w, b))
    return params


def mlp_reference(x, params):
    h = x.astype(jnp.float32)
    for (w, b) in params[:-1]:
        h = _gelu_exact(h @ w.T + b)
    w, b = params[-1]
    return h @ w.T + b


if __name__ == "__main__":
    key = jax.random.PRNGKey(0)
    kx, kp = jax.random.split(key)

    # B is deliberately NOT a multiple of the tile (exercises tail padding)
    # and the grid has length > 1 so megacore parallelism is exercised.
    B, input_dim = 1000, 2
    hidden_layers = (5, 5, 5)
    output_dim = 1

    x = jax.random.normal(kx, (B, input_dim), dtype=jnp.float32)
    params = init_params(kp, input_dim, hidden_layers, output_dim)

    out = mlp_forward(x, params, tm=256)
    out = jax.block_until_ready(out)

    ref = mlp_reference(x, params)
    assert out.shape == (B, output_dim)
    assert jnp.allclose(out, ref, atol=1e-5, rtol=1e-5), "mismatch vs reference"

    print("KERNEL_OK")
</pallas_src>

<mosaic_0001>
module attributes {stable_mosaic.version = 11 : i64} {
  func.func @kernel(%arg0: i32, %arg1: memref<81xf32, #tpu.memory_space<smem>>, %arg2: memref<2x256xf32, #tpu.memory_space<vmem>>, %arg3: memref<1x256xf32, #tpu.memory_space<vmem>>) attributes {dimension_semantics = [#tpu.dimension_semantics<parallel>], iteration_bounds = array<i64: 4>, scalar_prefetch = 0 : i64, scratch_operands = 0 : i64, tpu.core_type = #tpu.core_type<tc>, window_params = [{transform_indices = @transform_0, window_bounds = array<i64: 81>}, {transform_indices = @transform_1, window_bounds = array<i64: 2, 256>}, {transform_indices = @transform_2, window_bounds = array<i64: 1, 256>}]} {
    %c0 = arith.constant 0 : index
    %c0_0 = arith.constant 0 : index
    %0 = vector.load %arg2[%c0, %c0_0] : memref<2x256xf32, #tpu.memory_space<vmem>>, vector<2x256xf32>
    %1 = vector.extract_strided_slice %0 {offsets = [0, 0], sizes = [1, 256], strides = [1, 1]} : vector<2x256xf32> to vector<1x256xf32>
    %2 = vector.extract_strided_slice %0 {offsets = [1, 0], sizes = [1, 256], strides = [1, 1]} : vector<2x256xf32> to vector<1x256xf32>
    %c0_1 = arith.constant 0 : index
    %3 = memref.load %arg1[%c0_1] : memref<81xf32, #tpu.memory_space<smem>>
    %4 = vector.broadcast %3 : f32 to vector<1x256xf32>
    %5 = arith.mulf %4, %1 : vector<1x256xf32>
    %c1 = arith.constant 1 : index
    %6 = memref.load %arg1[%c1] : memref<81xf32, #tpu.memory_space<smem>>
    %7 = vector.broadcast %6 : f32 to vector<1x256xf32>
    %8 = arith.mulf %7, %2 : vector<1x256xf32>
    %9 = arith.addf %5, %8 : vector<1x256xf32>
    %c10 = arith.constant 10 : index
    %10 = memref.load %arg1[%c10] : memref<81xf32, #tpu.memory_space<smem>>
    %11 = vector.broadcast %10 : f32 to vector<1x256xf32>
    %12 = arith.addf %9, %11 : vector<1x256xf32>
    %cst = arith.constant 5.000000e-01 : f32
    %13 = vector.broadcast %cst : f32 to vector<1x256xf32>
    %14 = arith.mulf %13, %12 : vector<1x256xf32>
    %cst_2 = arith.constant 0.707106769 : f32
    %15 = vector.broadcast %cst_2 : f32 to vector<1x256xf32>
    %16 = arith.mulf %12, %15 : vector<1x256xf32>
    %17 = math.erf %16 : vector<1x256xf32>
    %cst_3 = arith.constant 1.000000e+00 : f32
    %18 = vector.broadcast %cst_3 : f32 to vector<1x256xf32>
    %19 = arith.addf %18, %17 : vector<1x256xf32>
    %20 = arith.mulf %14, %19 : vector<1x256xf32>
    %c2 = arith.constant 2 : index
    %21 = memref.load %arg1[%c2] : memref<81xf32, #tpu.memory_space<smem>>
    %22 = vector.broadcast %21 : f32 to vector<1x256xf32>
    %23 = arith.mulf %22, %1 : vector<1x256xf32>
    %c3 = arith.constant 3 : index
    %24 = memref.load %arg1[%c3] : memref<81xf32, #tpu.memory_space<smem>>
    %25 = vector.broadcast %24 : f32 to vector<1x256xf32>
    %26 = arith.mulf %25, %2 : vector<1x256xf32>
    %27 = arith.addf %23, %26 : vector<1x256xf32>
    %c11 = arith.constant 11 : index
    %28 = memref.load %arg1[%c11] : memref<81xf32, #tpu.memory_space<smem>>
    %29 = vector.broadcast %28 : f32 to vector<1x256xf32>
    %30 = arith.addf %27, %29 : vector<1x256xf32>
    %cst_4 = arith.constant 5.000000e-01 : f32
    %31 = vector.broadcast %cst_4 : f32 to vector<1x256xf32>
    %32 = arith.mulf %31, %30 : vector<1x256xf32>
    %cst_5 = arith.constant 0.707106769 : f32
    %33 = vector.broadcast %cst_5 : f32 to vector<1x256xf32>
    %34 = arith.mulf %30, %33 : vector<1x256xf32>
    %35 = math.erf %34 : vector<1x256xf32>
    %cst_6 = arith.constant 1.000000e+00 : f32
    %36 = vector.broadcast %cst_6 : f32 to vector<1x256xf32>
    %37 = arith.addf %36, %35 : vector<1x256xf32>
    %38 = arith.mulf %32, %37 : vector<1x256xf32>
    %c4 = arith.constant 4 : index
    %39 = memref.load %arg1[%c4] : memref<81xf32, #tpu.memory_space<smem>>
    %40 = vector.broadcast %39 : f32 to vector<1x256xf32>
    %41 = arith.mulf %40, %1 : vector<1x256xf32>
    %c5 = arith.constant 5 : index
    %42 = memref.load %arg1[%c5] : memref<81xf32, #tpu.memory_space<smem>>
    %43 = vector.broadcast %42 : f32 to vector<1x256xf32>
    %44 = arith.mulf %43, %2 : vector<1x256xf32>
    %45 = arith.addf %41, %44 : vector<1x256xf32>
    %c12 = arith.constant 12 : index
    %46 = memref.load %arg1[%c12] : memref<81xf32, #tpu.memory_space<smem>>
    %47 = vector.broadcast %46 : f32 to vector<1x256xf32>
    %48 = arith.addf %45, %47 : vector<1x256xf32>
    %cst_7 = arith.constant 5.000000e-01 : f32
    %49 = vector.broadcast %cst_7 : f32 to vector<1x256xf32>
    %50 = arith.mulf %49, %48 : vector<1x256xf32>
    %cst_8 = arith.constant 0.707106769 : f32
    %51 = vector.broadcast %cst_8 : f32 to vector<1x256xf32>
    %52 = arith.mulf %48, %51 : vector<1x256xf32>
    %53 = math.erf %52 : vector<1x256xf32>
    %cst_9 = arith.constant 1.000000e+00 : f32
    %54 = vector.broadcast %cst_9 : f32 to vector<1x256xf32>
    %55 = arith.addf %54, %53 : vector<1x256xf32>
    %56 = arith.mulf %50, %55 : vector<1x256xf32>
    %c6 = arith.constant 6 : index
    %57 = memref.load %arg1[%c6] : memref<81xf32, #tpu.memory_space<smem>>
    %58 = vector.broadcast %57 : f32 to vector<1x256xf32>
    %59 = arith.mulf %58, %1 : vector<1x256xf32>
    %c7 = arith.constant 7 : index
    %60 = memref.load %arg1[%c7] : memref<81xf32, #tpu.memory_space<smem>>
    %61 = vector.broadcast %60 : f32 to vector<1x256xf32>
    %62 = arith.mulf %61, %2 : vector<1x256xf32>
    %63 = arith.addf %59, %62 : vector<1x256xf32>
    %c13 = arith.constant 13 : index
    %64 = memref.load %arg1[%c13] : memref<81xf32, #tpu.memory_space<smem>>
    %65 = vector.broadcast %64 : f32 to vector<1x256xf32>
    %66 = arith.addf %63, %65 : vector<1x256xf32>
    %cst_10 = arith.constant 5.000000e-01 : f32
    %67 = vector.broadcast %cst_10 : f32 to vector<1x256xf32>
    %68 = arith.mulf %67, %66 : vector<1x256xf32>
    %cst_11 = arith.constant 0.707106769 : f32
    %69 = vector.broadcast %cst_11 : f32 to vector<1x256xf32>
    %70 = arith.mulf %66, %69 : vector<1x256xf32>
    %71 = math.erf %70 : vector<1x256xf32>
    %cst_12 = arith.constant 1.000000e+00 : f32
    %72 = vector.broadcast %cst_12 : f32 to vector<1x256xf32>
    %73 = arith.addf %72, %71 : vector<1x256xf32>
    %74 = arith.mulf %68, %73 : vector<1x256xf32>
    %c8 = arith.constant 8 : index
    %75 = memref.load %arg1[%c8] : memref<81xf32, #tpu.memory_space<smem>>
    %76 = vector.broadcast %75 : f32 to vector<1x256xf32>
    %77 = arith.mulf %76, %1 : vector<1x256xf32>
    %c9 = arith.constant 9 : index
    %78 = memref.load %arg1[%c9] : memref<81xf32, #tpu.memory_space<smem>>
    %79 = vector.broadcast %78 : f32 to vector<1x256xf32>
    %80 = arith.mulf %79, %2 : vector<1x256xf32>
    %81 = arith.addf %77, %80 : vector<1x256xf32>
    %c14 = arith.constant 14 : index
    %82 = memref.load %arg1[%c14] : memref<81xf32, #tpu.memory_space<smem>>
    %83 = vector.broadcast %82 : f32 to vector<1x256xf32>
    %84 = arith.addf %81, %83 : vector<1x256xf32>
    %cst_13 = arith.constant 5.000000e-01 : f32
    %85 = vector.broadcast %cst_13 : f32 to vector<1x256xf32>
    %86 = arith.mulf %85, %84 : vector<1x256xf32>
    %cst_14 = arith.constant 0.707106769 : f32
    %87 = vector.broadcast %cst_14 : f32 to vector<1x256xf32>
    %88 = arith.mulf %84, %87 : vector<1x256xf32>
    %89 = math.erf %88 : vector<1x256xf32>
    %cst_15 = arith.constant 1.000000e+00 : f32
    %90 = vector.broadcast %cst_15 : f32 to vector<1x256xf32>
    %91 = arith.addf %90, %89 : vector<1x256xf32>
    %92 = arith.mulf %86, %91 : vector<1x256xf32>
    %c15 = arith.constant 15 : index
    %93 = memref.load %arg1[%c15] : memref<81xf32, #tpu.memory_space<smem>>
    %94 = vector.broadcast %93 : f32 to vector<1x256xf32>
    %95 = arith.mulf %94, %20 : vector<1x256xf32>
    %c16 = arith.constant 16 : index
    %96 = memref.load %arg1[%c16] : memref<81xf32, #tpu.memory_space<smem>>
    %97 = vector.broadcast %96 : f32 to vector<1x256xf32>
    %98 = arith.mulf %97, %38 : vector<1x256xf32>
    %99 = arith.addf %95, %98 : vector<1x256xf32>
    %c17 = arith.constant 17 : index
    %100 = memref.load %arg1[%c17] : memref<81xf32, #tpu.memory_space<smem>>
    %101 = vector.broadcast %100 : f32 to vector<1x256xf32>
    %102 = arith.mulf %101, %56 : vector<1x256xf32>
    %103 = arith.addf %99, %102 : vector<1x256xf32>
    %c18 = arith.constant 18 : index
    %104 = memref.load %arg1[%c18] : memref<81xf32, #tpu.memory_space<smem>>
    %105 = vector.broadcast %104 : f32 to vector<1x256xf32>
    %106 = arith.mulf %105, %74 : vector<1x256xf32>
    %107 = arith.addf %103, %106 : vector<1x256xf32>
    %c19 = arith.constant 19 : index
    %108 = memref.load %arg1[%c19] : memref<81xf32, #tpu.memory_space<smem>>
    %109 = vector.broadcast %108 : f32 to vector<1x256xf32>
    %110 = arith.mulf %109, %92 : vector<1x256xf32>
    %111 = arith.addf %107, %110 : vector<1x256xf32>
    %c40 = arith.constant 40 : index
    %112 = memref.load %arg1[%c40] : memref<81xf32, #tpu.memory_space<smem>>
    %113 = vector.broadcast %112 : f32 to vector<1x256xf32>
    %114 = arith.addf %111, %113 : vector<1x256xf32>
    %cst_16 = arith.constant 5.000000e-01 : f32
    %115 = vector.broadcast %cst_16 : f32 to vector<1x256xf32>
    %116 = arith.mulf %115, %114 : vector<1x256xf32>
    %cst_17 = arith.constant 0.707106769 : f32
    %117 = vector.broadcast %cst_17 : f32 to vector<1x256xf32>
    %118 = arith.mulf %114, %117 : vector<1x256xf32>
    %119 = math.erf %118 : vector<1x256xf32>
    %cst_18 = arith.constant 1.000000e+00 : f32
    %120 = vector.broadcast %cst_18 : f32 to vector<1x256xf32>
    %121 = arith.addf %120, %119 : vector<1x256xf32>
    %122 = arith.mulf %116, %121 : vector<1x256xf32>
    %c20 = arith.constant 20 : index
    %123 = memref.load %arg1[%c20] : memref<81xf32, #tpu.memory_space<smem>>
    %124 = vector.broadcast %123 : f32 to vector<1x256xf32>
    %125 = arith.mulf %124, %20 : vector<1x256xf32>
    %c21 = arith.constant 21 : index
    %126 = memref.load %arg1[%c21] : memref<81xf32, #tpu.memory_space<smem>>
    %127 = vector.broadcast %126 : f32 to vector<1x256xf32>
    %128 = arith.mulf %127, %38 : vector<1x256xf32>
    %129 = arith.addf %125, %128 : vector<1x256xf32>
    %c22 = arith.constant 22 : index
    %130 = memref.load %arg1[%c22] : memref<81xf32, #tpu.memory_space<smem>>
    %131 = vector.broadcast %130 : f32 to vector<1x256xf32>
    %132 = arith.mulf %131, %56 : vector<1x256xf32>
    %133 = arith.addf %129, %132 : vector<1x256xf32>
    %c23 = arith.constant 23 : index
    %134 = memref.load %arg1[%c23] : memref<81xf32, #tpu.memory_space<smem>>
    %135 = vector.broadcast %134 : f32 to vector<1x256xf32>
    %136 = arith.mulf %135, %74 : vector<1x256xf32>
    %137 = arith.addf %133, %136 : vector<1x256xf32>
    %c24 = arith.constant 24 : index
    %138 = memref.load %arg1[%c24] : memref<81xf32, #tpu.memory_space<smem>>
    %139 = vector.broadcast %138 : f32 to vector<1x256xf32>
    %140 = arith.mulf %139, %92 : vector<1x256xf32>
    %141 = arith.addf %137, %140 : vector<1x256xf32>
    %c41 = arith.constant 41 : index
    %142 = memref.load %arg1[%c41] : memref<81xf32, #tpu.memory_space<smem>>
    %143 = vector.broadcast %142 : f32 to vector<1x256xf32>
    %144 = arith.addf %141, %143 : vector<1x256xf32>
    %cst_19 = arith.constant 5.000000e-01 : f32
    %145 = vector.broadcast %cst_19 : f32 to vector<1x256xf32>
    %146 = arith.mulf %145, %144 : vector<1x256xf32>
    %cst_20 = arith.constant 0.707106769 : f32
    %147 = vector.broadcast %cst_20 : f32 to vector<1x256xf32>
    %148 = arith.mulf %144, %147 : vector<1x256xf32>
    %149 = math.erf %148 : vector<1x256xf32>
    %cst_21 = arith.constant 1.000000e+00 : f32
    %150 = vector.broadcast %cst_21 : f32 to vector<1x256xf32>
    %151 = arith.addf %150, %149 : vector<1x256xf32>
    %152 = arith.mulf %146, %151 : vector<1x256xf32>
    %c25 = arith.constant 25 : index
    %153 = memref.load %arg1[%c25] : memref<81xf32, #tpu.memory_space<smem>>
    %154 = vector.broadcast %153 : f32 to vector<1x256xf32>
    %155 = arith.mulf %154, %20 : vector<1x256xf32>
    %c26 = arith.constant 26 : index
    %156 = memref.load %arg1[%c26] : memref<81xf32, #tpu.memory_space<smem>>
    %157 = vector.broadcast %156 : f32 to vector<1x256xf32>
    %158 = arith.mulf %157, %38 : vector<1x256xf32>
    %159 = arith.addf %155, %158 : vector<1x256xf32>
    %c27 = arith.constant 27 : index
    %160 = memref.load %arg1[%c27] : memref<81xf32, #tpu.memory_space<smem>>
    %161 = vector.broadcast %160 : f32 to vector<1x256xf32>
    %162 = arith.mulf %161, %56 : vector<1x256xf32>
    %163 = arith.addf %159, %162 : vector<1x256xf32>
    %c28 = arith.constant 28 : index
    %164 = memref.load %arg1[%c28] : memref<81xf32, #tpu.memory_space<smem>>
    %165 = vector.broadcast %164 : f32 to vector<1x256xf32>
    %166 = arith.mulf %165, %74 : vector<1x256xf32>
    %167 = arith.addf %163, %166 : vector<1x256xf32>
    %c29 = arith.constant 29 : index
    %168 = memref.load %arg1[%c29] : memref<81xf32, #tpu.memory_space<smem>>
    %169 = vector.broadcast %168 : f32 to vector<1x256xf32>
    %170 = arith.mulf %169, %92 : vector<1x256xf32>
    %171 = arith.addf %167, %170 : vector<1x256xf32>
    %c42 = arith.constant 42 : index
    %172 = memref.load %arg1[%c42] : memref<81xf32, #tpu.memory_space<smem>>
    %173 = vector.broadcast %172 : f32 to vector<1x256xf32>
    %174 = arith.addf %171, %173 : vector<1x256xf32>
    %cst_22 = arith.constant 5.000000e-01 : f32
    %175 = vector.broadcast %cst_22 : f32 to vector<1x256xf32>
    %176 = arith.mulf %175, %174 : vector<1x256xf32>
    %cst_23 = arith.constant 0.707106769 : f32
    %177 = vector.broadcast %cst_23 : f32 to vector<1x256xf32>
    %178 = arith.mulf %174, %177 : vector<1x256xf32>
    %179 = math.erf %178 : vector<1x256xf32>
    %cst_24 = arith.constant 1.000000e+00 : f32
    %180 = vector.broadcast %cst_24 : f32 to vector<1x256xf32>
    %181 = arith.addf %180, %179 : vector<1x256xf32>
    %182 = arith.mulf %176, %181 : vector<1x256xf32>
    %c30 = arith.constant 30 : index
    %183 = memref.load %arg1[%c30] : memref<81xf32, #tpu.memory_space<smem>>
    %184 = vector.broadcast %183 : f32 to vector<1x256xf32>
    %185 = arith.mulf %184, %20 : vector<1x256xf32>
    %c31 = arith.constant 31 : index
    %186 = memref.load %arg1[%c31] : memref<81xf32, #tpu.memory_space<smem>>
    %187 = vector.broadcast %186 : f32 to vector<1x256xf32>
    %188 = arith.mulf %187, %38 : vector<1x256xf32>
    %189 = arith.addf %185, %188 : vector<1x256xf32>
    %c32 = arith.constant 32 : index
    %190 = memref.load %arg1[%c32] : memref<81xf32, #tpu.memory_space<smem>>
    %191 = vector.broadcast %190 : f32 to vector<1x256xf32>
    %192 = arith.mulf %191, %56 : vector<1x256xf32>
    %193 = arith.addf %189, %192 : vector<1x256xf32>
    %c33 = arith.constant 33 : index
    %194 = memref.load %arg1[%c33] : memref<81xf32, #tpu.memory_space<smem>>
    %195 = vector.broadcast %194 : f32 to vector<1x256xf32>
    %196 = arith.mulf %195, %74 : vector<1x256xf32>
    %197 = arith.addf %193, %196 : vector<1x256xf32>
    %c34 = arith.constant 34 : index
    %198 = memref.load %arg1[%c34] : memref<81xf32, #tpu.memory_space<smem>>
    %199 = vector.broadcast %198 : f32 to vector<1x256xf32>
    %200 = arith.mulf %199, %92 : vector<1x256xf32>
    %201 = arith.addf %197, %200 : vector<1x256xf32>
    %c43 = arith.constant 43 : index
    %202 = memref.load %arg1[%c43] : memref<81xf32, #tpu.memory_space<smem>>
    %203 = vector.broadcast %202 : f32 to vector<1x256xf32>
    %204 = arith.addf %201, %203 : vector<1x256xf32>
    %cst_25 = arith.constant 5.000000e-01 : f32
    %205 = vector.broadcast %cst_25 : f32 to vector<1x256xf32>
    %206 = arith.mulf %205, %204 : vector<1x256xf32>
    %cst_26 = arith.constant 0.707106769 : f32
    %207 = vector.broadcast %cst_26 : f32 to vector<1x256xf32>
    %208 = arith.mulf %204, %207 : vector<1x256xf32>
    %209 = math.erf %208 : vector<1x256xf32>
    %cst_27 = arith.constant 1.000000e+00 : f32
    %210 = vector.broadcast %cst_27 : f32 to vector<1x256xf32>
    %211 = arith.addf %210, %209 : vector<1x256xf32>
    %212 = arith.mulf %206, %211 : vector<1x256xf32>
    %c35 = arith.constant 35 : index
    %213 = memref.load %arg1[%c35] : memref<81xf32, #tpu.memory_space<smem>>
    %214 = vector.broadcast %213 : f32 to vector<1x256xf32>
    %215 = arith.mulf %214, %20 : vector<1x256xf32>
    %c36 = arith.constant 36 : index
    %216 = memref.load %arg1[%c36] : memref<81xf32, #tpu.memory_space<smem>>
    %217 = vector.broadcast %216 : f32 to vector<1x256xf32>
    %218 = arith.mulf %217, %38 : vector<1x256xf32>
    %219 = arith.addf %215, %218 : vector<1x256xf32>
    %c37 = arith.constant 37 : index
    %220 = memref.load %arg1[%c37] : memref<81xf32, #tpu.memory_space<smem>>
    %221 = vector.broadcast %220 : f32 to vector<1x256xf32>
    %222 = arith.mulf %221, %56 : vector<1x256xf32>
    %223 = arith.addf %219, %222 : vector<1x256xf32>
    %c38 = arith.constant 38 : index
    %224 = memref.load %arg1[%c38] : memref<81xf32, #tpu.memory_space<smem>>
    %225 = vector.broadcast %224 : f32 to vector<1x256xf32>
    %226 = arith.mulf %225, %74 : vector<1x256xf32>
    %227 = arith.addf %223, %226 : vector<1x256xf32>
    %c39 = arith.constant 39 : index
    %228 = memref.load %arg1[%c39] : memref<81xf32, #tpu.memory_space<smem>>
    %229 = vector.broadcast %228 : f32 to vector<1x256xf32>
    %230 = arith.mulf %229, %92 : vector<1x256xf32>
    %231 = arith.addf %227, %230 : vector<1x256xf32>
    %c44 = arith.constant 44 : index
    %232 = memref.load %arg1[%c44] : memref<81xf32, #tpu.memory_space<smem>>
    %233 = vector.broadcast %232 : f32 to vector<1x256xf32>
    %234 = arith.addf %231, %233 : vector<1x256xf32>
    %cst_28 = arith.constant 5.000000e-01 : f32
    %235 = vector.broadcast %cst_28 : f32 to vector<1x256xf32>
    %236 = arith.mulf %235, %234 : vector<1x256xf32>
    %cst_29 = arith.constant 0.707106769 : f32
    %237 = vector.broadcast %cst_29 : f32 to vector<1x256xf32>
    %238 = arith.mulf %234, %237 : vector<1x256xf32>
    %239 = math.erf %238 : vector<1x256xf32>
    %cst_30 = arith.constant 1.000000e+00 : f32
    %240 = vector.broadcast %cst_30 : f32 to vector<1x256xf32>
    %241 = arith.addf %240, %239 : vector<1x256xf32>
    %242 = arith.mulf %236, %241 : vector<1x256xf32>
    %c45 = arith.constant 45 : index
    %243 = memref.load %arg1[%c45] : memref<81xf32, #tpu.memory_space<smem>>
    %244 = vector.broadcast %243 : f32 to vector<1x256xf32>
    %245 = arith.mulf %244, %122 : vector<1x256xf32>
    %c46 = arith.constant 46 : index
    %246 = memref.load %arg1[%c46] : memref<81xf32, #tpu.memory_space<smem>>
    %247 = vector.broadcast %246 : f32 to vector<1x256xf32>
    %248 = arith.mulf %247, %152 : vector<1x256xf32>
    %249 = arith.addf %245, %248 : vector<1x256xf32>
    %c47 = arith.constant 47 : index
    %250 = memref.load %arg1[%c47] : memref<81xf32, #tpu.memory_space<smem>>
    %251 = vector.broadcast %250 : f32 to vector<1x256xf32>
    %252 = arith.mulf %251, %182 : vector<1x256xf32>
    %253 = arith.addf %249, %252 : vector<1x256xf32>
    %c48 = arith.constant 48 : index
    %254 = memref.load %arg1[%c48] : memref<81xf32, #tpu.memory_space<smem>>
    %255 = vector.broadcast %254 : f32 to vector<1x256xf32>
    %256 = arith.mulf %255, %212 : vector<1x256xf32>
    %257 = arith.addf %253, %256 : vector<1x256xf32>
    %c49 = arith.constant 49 : index
    %258 = memref.load %arg1[%c49] : memref<81xf32, #tpu.memory_space<smem>>
    %259 = vector.broadcast %258 : f32 to vector<1x256xf32>
    %260 = arith.mulf %259, %242 : vector<1x256xf32>
    %261 = arith.addf %257, %260 : vector<1x256xf32>
    %c70 = arith.constant 70 : index
    %262 = memref.load %arg1[%c70] : memref<81xf32, #tpu.memory_space<smem>>
    %263 = vector.broadcast %262 : f32 to vector<1x256xf32>
    %264 = arith.addf %261, %263 : vector<1x256xf32>
    %cst_31 = arith.constant 5.000000e-01 : f32
    %265 = vector.broadcast %cst_31 : f32 to vector<1x256xf32>
    %266 = arith.mulf %265, %264 : vector<1x256xf32>
    %cst_32 = arith.constant 0.707106769 : f32
    %267 = vector.broadcast %cst_32 : f32 to vector<1x256xf32>
    %268 = arith.mulf %264, %267 : vector<1x256xf32>
    %269 = math.erf %268 : vector<1x256xf32>
    %cst_33 = arith.constant 1.000000e+00 : f32
    %270 = vector.broadcast %cst_33 : f32 to vector<1x256xf32>
    %271 = arith.addf %270, %269 : vector<1x256xf32>
    %272 = arith.mulf %266, %271 : vector<1x256xf32>
    %c50 = arith.constant 50 : index
    %273 = memref.load %arg1[%c50] : memref<81xf32, #tpu.memory_space<smem>>
    %274 = vector.broadcast %273 : f32 to vector<1x256xf32>
    %275 = arith.mulf %274, %122 : vector<1x256xf32>
    %c51 = arith.constant 51 : index
    %276 = memref.load %arg1[%c51] : memref<81xf32, #tpu.memory_space<smem>>
    %277 = vector.broadcast %276 : f32 to vector<1x256xf32>
    %278 = arith.mulf %277, %152 : vector<1x256xf32>
    %279 = arith.addf %275, %278 : vector<1x256xf32>
    %c52 = arith.constant 52 : index
    %280 = memref.load %arg1[%c52] : memref<81xf32, #tpu.memory_space<smem>>
    %281 = vector.broadcast %280 : f32 to vector<1x256xf32>
    %282 = arith.mulf %281, %182 : vector<1x256xf32>
    %283 = arith.addf %279, %282 : vector<1x256xf32>
    %c53 = arith.constant 53 : index
    %284 = memref.load %arg1[%c53] : memref<81xf32, #tpu.memory_space<smem>>
    %285 = vector.broadcast %284 : f32 to vector<1x256xf32>
    %286 = arith.mulf %285, %212 : vector<1x256xf32>
    %287 = arith.addf %283, %286 : vector<1x256xf32>
    %c54 = arith.constant 54 : index
    %288 = memref.load %arg1[%c54] : memref<81xf32, #tpu.memory_space<smem>>
    %289 = vector.broadcast %288 : f32 to vector<1x256xf32>
    %290 = arith.mulf %289, %242 : vector<1x256xf32>
    %291 = arith.addf %287, %290 : vector<1x256xf32>
    %c71 = arith.constant 71 : index
    %292 = memref.load %arg1[%c71] : memref<81xf32, #tpu.memory_space<smem>>
    %293 = vector.broadcast %292 : f32 to vector<1x256xf32>
    %294 = arith.addf %291, %293 : vector<1x256xf32>
    %cst_34 = arith.constant 5.000000e-01 : f32
    %295 = vector.broadcast %cst_34 : f32 to vector<1x256xf32>
    %296 = arith.mulf %295, %294 : vector<1x256xf32>
    %cst_35 = arith.constant 0.707106769 : f32
    %297 = vector.broadcast %cst_35 : f32 to vector<1x256xf32>
    %298 = arith.mulf %294, %297 : vector<1x256xf32>
    %299 = math.erf %298 : vector<1x256xf32>
    %cst_36 = arith.constant 1.000000e+00 : f32
    %300 = vector.broadcast %cst_36 : f32 to vector<1x256xf32>
    %301 = arith.addf %300, %299 : vector<1x256xf32>
    %302 = arith.mulf %296, %301 : vector<1x256xf32>
    %c55 = arith.constant 55 : index
    %303 = memref.load %arg1[%c55] : memref<81xf32, #tpu.memory_space<smem>>
    %304 = vector.broadcast %303 : f32 to vector<1x256xf32>
    %305 = arith.mulf %304, %122 : vector<1x256xf32>
    %c56 = arith.constant 56 : index
    %306 = memref.load %arg1[%c56] : memref<81xf32, #tpu.memory_space<smem>>
    %307 = vector.broadcast %306 : f32 to vector<1x256xf32>
    %308 = arith.mulf %307, %152 : vector<1x256xf32>
    %309 = arith.addf %305, %308 : vector<1x256xf32>
    %c57 = arith.constant 57 : index
    %310 = memref.load %arg1[%c57] : memref<81xf32, #tpu.memory_space<smem>>
    %311 = vector.broadcast %310 : f32 to vector<1x256xf32>
    %312 = arith.mulf %311, %182 : vector<1x256xf32>
    %313 = arith.addf %309, %312 : vector<1x256xf32>
    %c58 = arith.constant 58 : index
    %314 = memref.load %arg1[%c58] : memref<81xf32, #tpu.memory_space<smem>>
    %315 = vector.broadcast %314 : f32 to vector<1x256xf32>
    %316 = arith.mulf %315, %212 : vector<1x256xf32>
    %317 = arith.addf %313, %316 : vector<1x256xf32>
    %c59 = arith.constant 59 : index
    %318 = memref.load %arg1[%c59] : memref<81xf32, #tpu.memory_space<smem>>
    %319 = vector.broadcast %318 : f32 to vector<1x256xf32>
    %320 = arith.mulf %319, %242 : vector<1x256xf32>
    %321 = arith.addf %317, %320 : vector<1x256xf32>
    %c72 = arith.constant 72 : index
    %322 = memref.load %arg1[%c72] : memref<81xf32, #tpu.memory_space<smem>>
    %323 = vector.broadcast %322 : f32 to vector<1x256xf32>
    %324 = arith.addf %321, %323 : vector<1x256xf32>
    %cst_37 = arith.constant 5.000000e-01 : f32
    %325 = vector.broadcast %cst_37 : f32 to vector<1x256xf32>
    %326 = arith.mulf %325, %324 : vector<1x256xf32>
    %cst_38 = arith.constant 0.707106769 : f32
    %327 = vector.broadcast %cst_38 : f32 to vector<1x256xf32>
    %328 = arith.mulf %324, %327 : vector<1x256xf32>
    %329 = math.erf %328 : vector<1x256xf32>
    %cst_39 = arith.constant 1.000000e+00 : f32
    %330 = vector.broadcast %cst_39 : f32 to vector<1x256xf32>
    %331 = arith.addf %330, %329 : vector<1x256xf32>
    %332 = arith.mulf %326, %331 : vector<1x256xf32>
    %c60 = arith.constant 60 : index
    %333 = memref.load %arg1[%c60] : memref<81xf32, #tpu.memory_space<smem>>
    %334 = vector.broadcast %333 : f32 to vector<1x256xf32>
    %335 = arith.mulf %334, %122 : vector<1x256xf32>
    %c61 = arith.constant 61 : index
    %336 = memref.load %arg1[%c61] : memref<81xf32, #tpu.memory_space<smem>>
    %337 = vector.broadcast %336 : f32 to vector<1x256xf32>
    %338 = arith.mulf %337, %152 : vector<1x256xf32>
    %339 = arith.addf %335, %338 : vector<1x256xf32>
    %c62 = arith.constant 62 : index
    %340 = memref.load %arg1[%c62] : memref<81xf32, #tpu.memory_space<smem>>
    %341 = vector.broadcast %340 : f32 to vector<1x256xf32>
    %342 = arith.mulf %341, %182 : vector<1x256xf32>
    %343 = arith.addf %339, %342 : vector<1x256xf32>
    %c63 = arith.constant 63 : index
    %344 = memref.load %arg1[%c63] : memref<81xf32, #tpu.memory_space<smem>>
    %345 = vector.broadcast %344 : f32 to vector<1x256xf32>
    %346 = arith.mulf %345, %212 : vector<1x256xf32>
    %347 = arith.addf %343, %346 : vector<1x256xf32>
    %c64 = arith.constant 64 : index
    %348 = memref.load %arg1[%c64] : memref<81xf32, #tpu.memory_space<smem>>
    %349 = vector.broadcast %348 : f32 to vector<1x256xf32>
    %350 = arith.mulf %349, %242 : vector<1x256xf32>
    %351 = arith.addf %347, %350 : vector<1x256xf32>
    %c73 = arith.constant 73 : index
    %352 = memref.load %arg1[%c73] : memref<81xf32, #tpu.memory_space<smem>>
    %353 = vector.broadcast %352 : f32 to vector<1x256xf32>
    %354 = arith.addf %351, %353 : vector<1x256xf32>
    %cst_40 = arith.constant 5.000000e-01 : f32
    %355 = vector.broadcast %cst_40 : f32 to vector<1x256xf32>
    %356 = arith.mulf %355, %354 : vector<1x256xf32>
    %cst_41 = arith.constant 0.707106769 : f32
    %357 = vector.broadcast %cst_41 : f32 to vector<1x256xf32>
    %358 = arith.mulf %354, %357 : vector<1x256xf32>
    %359 = math.erf %358 : vector<1x256xf32>
    %cst_42 = arith.constant 1.000000e+00 : f32
    %360 = vector.broadcast %cst_42 : f32 to vector<1x256xf32>
    %361 = arith.addf %360, %359 : vector<1x256xf32>
    %362 = arith.mulf %356, %361 : vector<1x256xf32>
    %c65 = arith.constant 65 : index
    %363 = memref.load %arg1[%c65] : memref<81xf32, #tpu.memory_space<smem>>
    %364 = vector.broadcast %363 : f32 to vector<1x256xf32>
    %365 = arith.mulf %364, %122 : vector<1x256xf32>
    %c66 = arith.constant 66 : index
    %366 = memref.load %arg1[%c66] : memref<81xf32, #tpu.memory_space<smem>>
    %367 = vector.broadcast %366 : f32 to vector<1x256xf32>
    %368 = arith.mulf %367, %152 : vector<1x256xf32>
    %369 = arith.addf %365, %368 : vector<1x256xf32>
    %c67 = arith.constant 67 : index
    %370 = memref.load %arg1[%c67] : memref<81xf32, #tpu.memory_space<smem>>
    %371 = vector.broadcast %370 : f32 to vector<1x256xf32>
    %372 = arith.mulf %371, %182 : vector<1x256xf32>
    %373 = arith.addf %369, %372 : vector<1x256xf32>
    %c68 = arith.constant 68 : index
    %374 = memref.load %arg1[%c68] : memref<81xf32, #tpu.memory_space<smem>>
    %375 = vector.broadcast %374 : f32 to vector<1x256xf32>
    %376 = arith.mulf %375, %212 : vector<1x256xf32>
    %377 = arith.addf %373, %376 : vector<1x256xf32>
    %c69 = arith.constant 69 : index
    %378 = memref.load %arg1[%c69] : memref<81xf32, #tpu.memory_space<smem>>
    %379 = vector.broadcast %378 : f32 to vector<1x256xf32>
    %380 = arith.mulf %379, %242 : vector<1x256xf32>
    %381 = arith.addf %377, %380 : vector<1x256xf32>
    %c74 = arith.constant 74 : index
    %382 = memref.load %arg1[%c74] : memref<81xf32, #tpu.memory_space<smem>>
    %383 = vector.broadcast %382 : f32 to vector<1x256xf32>
    %384 = arith.addf %381, %383 : vector<1x256xf32>
    %cst_43 = arith.constant 5.000000e-01 : f32
    %385 = vector.broadcast %cst_43 : f32 to vector<1x256xf32>
    %386 = arith.mulf %385, %384 : vector<1x256xf32>
    %cst_44 = arith.constant 0.707106769 : f32
    %387 = vector.broadcast %cst_44 : f32 to vector<1x256xf32>
    %388 = arith.mulf %384, %387 : vector<1x256xf32>
    %389 = math.erf %388 : vector<1x256xf32>
    %cst_45 = arith.constant 1.000000e+00 : f32
    %390 = vector.broadcast %cst_45 : f32 to vector<1x256xf32>
    %391 = arith.addf %390, %389 : vector<1x256xf32>
    %392 = arith.mulf %386, %391 : vector<1x256xf32>
    %c75 = arith.constant 75 : index
    %393 = memref.load %arg1[%c75] : memref<81xf32, #tpu.memory_space<smem>>
    %394 = vector.broadcast %393 : f32 to vector<1x256xf32>
    %395 = arith.mulf %394, %272 : vector<1x256xf32>
    %c76 = arith.constant 76 : index
    %396 = memref.load %arg1[%c76] : memref<81xf32, #tpu.memory_space<smem>>
    %397 = vector.broadcast %396 : f32 to vector<1x256xf32>
    %398 = arith.mulf %397, %302 : vector<1x256xf32>
    %399 = arith.addf %395, %398 : vector<1x256xf32>
    %c77 = arith.constant 77 : index
    %400 = memref.load %arg1[%c77] : memref<81xf32, #tpu.memory_space<smem>>
    %401 = vector.broadcast %400 : f32 to vector<1x256xf32>
    %402 = arith.mulf %401, %332 : vector<1x256xf32>
    %403 = arith.addf %399, %402 : vector<1x256xf32>
    %c78 = arith.constant 78 : index
    %404 = memref.load %arg1[%c78] : memref<81xf32, #tpu.memory_space<smem>>
    %405 = vector.broadcast %404 : f32 to vector<1x256xf32>
    %406 = arith.mulf %405, %362 : vector<1x256xf32>
    %407 = arith.addf %403, %406 : vector<1x256xf32>
    %c79 = arith.constant 79 : index
    %408 = memref.load %arg1[%c79] : memref<81xf32, #tpu.memory_space<smem>>
    %409 = vector.broadcast %408 : f32 to vector<1x256xf32>
    %410 = arith.mulf %409, %392 : vector<1x256xf32>
    %411 = arith.addf %407, %410 : vector<1x256xf32>
    %c80 = arith.constant 80 : index
    %412 = memref.load %arg1[%c80] : memref<81xf32, #tpu.memory_space<smem>>
    %413 = vector.broadcast %412 : f32 to vector<1x256xf32>
    %414 = arith.addf %411, %413 : vector<1x256xf32>
    %c0_46 = arith.constant 0 : index
    %c0_47 = arith.constant 0 : index
    %415 = vector.load %arg3[%c0_46, %c0_47] : memref<1x256xf32, #tpu.memory_space<vmem>>, vector<1x256xf32>
    tpu.vector_store %arg3[%c0_46, %c0_47], %414 {strides = array<i32>} : memref<1x256xf32, #tpu.memory_space<vmem>>, vector<1x256xf32>,
    return
  }
  func.func @transform_0(%arg0: i32) -> i32 {
    %c0_i32 = arith.constant 0 : i32
    %c0_i32_0 = arith.constant 0 : i32
    return %c0_i32 : i32
  }
  func.func @transform_1(%arg0: i32) -> (i32, i32) {
    %c0_i32 = arith.constant 0 : i32
    %c0_i32_0 = arith.constant 0 : i32
    return %c0_i32, %arg0 : i32, i32
  }
  func.func @transform_2(%arg0: i32) -> (i32, i32) {
    %c0_i32 = arith.constant 0 : i32
    %c0_i32_0 = arith.constant 0 : i32
    return %c0_i32, %arg0 : i32, i32
  }
}

</mosaic_0001>

<llo_original>
// kernel: tpu_custom_call.1
$region0: #{tpu_custom_call.1}
  #allocation0 [shape = 'u32[]', space=smem, size = 0x4, offset = 0x4, fixed_abs, tag = 'smem constant byte address 0x4 - core index']
  #allocation1 [shape = 'u32[144,128]{1,0:T(1,128)}', space=vmem, size = 0x12000, scoped, tag = 'internal scratch']
  %s0 = inlined_call_operand.hbm [shape: f32[81], index: 0, kind: input, shape index: {}]
  %s1 = inlined_call_operand.hbm [shape: f32[2,1024], index: 1, kind: input, shape index: {}]
  %s2 = inlined_call_operand.hbm [shape: f32[1,1024], index: 2, kind: output, shape index: {}]
  %s3 = sld [smem:[#allocation0]]
  $region49: #{tpu_custom_call.1} parent=0
    _
  %s5 = ssub.s32 1, %s3
  %s6 = scalar_select 0, %s5, %s3
  $region1: #{tpu_custom_call.1} parent=0
    #allocation2 [shape = 'u8[512]{0}', space=smem, size = 0x200, scoped, tag = 'input window, operand 0, single buffered']
    #allocation3 [shape = 's32[2]{0}', space=sflag, size = 0x8, scoped, tag = 'scoped memory for tpu_custom_call.1']
    #allocation4 [shape = 's32[2]{0}', space=sflag, size = 0x8, scoped, tag = 'scoped memory for tpu_custom_call.1']
    #allocation5 [shape = 's32[2]{0}', space=sflag, size = 0x8, scoped, tag = 'scoped memory for tpu_custom_call.1']
    #allocation6 [shape = 'u8[4096]{0}', space=vmem, size = 0x1000, scoped, tag = 'input window, operand 1']
    #allocation7 [shape = 'u8[2048]{0}', space=vmem, size = 0x800, scoped, tag = 'output window, operand 0']
    %7 = vsyncpa [#allocation5], 0
    %8 = vsyncpa [#allocation3], 0
    %s9 = scalar_lea.sflag [#allocation3], 1
    %10 = vsyncpa %s9, 0
    %11 = vsyncpa [#allocation4], 0
    %s12 = scalar_lea.sflag [#allocation4], 1
    %13 = vsyncpa %s12, 0
    loop: start=0, step=1, limit=6
    $region2: #{tpu_custom_call.1} parent=1 // loop_pre_header
      _
    $region3: #{tpu_custom_call.1} parent=1 // loop_header
      %s15 = sphi 0, %s19
      %p16 = scmp.ge.s32.totalorder %s15, 6
      %s23 = sphi 0, %s23
      %s25 = sphi 0, %s23
      %s26 = sphi 0, %s25
      %s40 = sphi 0, %s26
      %s46 = sphi 0, %s48
      %s49 = sphi 0, %s46
      %s50 = sphi 0, %s49
      %s66 = sphi 0, %s50
      %s72 = sphi 0, %s74
      %s75 = sphi 0, %s72
      %s76 = sphi 0, %s75
      %s92 = sphi 0, %s76
    $region4: #{tpu_custom_call.1} parent=1 // loop_header_branch
      %18 = sbr.rel (%p16) target = $region8
    $region5: #{tpu_custom_call.1} parent=1 // loop_body
      %s20 = ssub.s32 %s15, 1
      %s21 = ssub.s32 %s15, 2
      %s22 = sadd.s32 %s15, 1
      %s24 = sadd.s32 %s23, 1
      %p27 = scmp.eq.s32.totalorder %s15, 3
      %p28 = scmp.ne.s32.totalorder %s23, %s25
      %p29 = scmp.eq.s32.totalorder %s15, 0
      %p30 = por %p28, %p29
      %p31 = scmp.ne.s32.totalorder %s23, %s25
      %p32 = scmp.eq.s32.totalorder %s20, 3
      %p33 = por %p31, %p32
      %p34 = scmp.ne.s32.totalorder %s25, %s26
      %p35 = scmp.eq.s32.totalorder %s20, 0
      %p36 = por %p34, %p35
      %p37 = scmp.ne.s32.totalorder %s25, %s26
      %p38 = scmp.eq.s32.totalorder %s21, 3
      %p39 = por %p37, %p38
      %p41 = scmp.ne.s32.totalorder %s26, %s40
      %p42 = scmp.eq.s32.totalorder %s21, 0
      %p43 = por %p41, %p42
      %s44 = ssub.s32 %s15, %s22
      %p45 = scmp.eq.s32.totalorder %s44, 0
      %s47 = sadd.s32 %s46, 1
      %s48 = scalar_select %p45, %s46, %s47
      %p51 = pneg %p45
      %p52 = scmp.eq.s32.totalorder %s15, 3
      %p53 = por %p51, %p52
      %p54 = scmp.ne.s32.totalorder %s46, %s49
      %p55 = scmp.eq.s32.totalorder %s15, 0
      %p56 = por %p54, %p55
      %p57 = scmp.ne.s32.totalorder %s46, %s49
      %p58 = scmp.eq.s32.totalorder %s20, 3
      %p59 = por %p57, %p58
      %p60 = scmp.ne.s32.totalorder %s49, %s50
      %p61 = scmp.eq.s32.totalorder %s20, 0
      %p62 = por %p60, %p61
      %p63 = scmp.ne.s32.totalorder %s49, %s50
      %p64 = scmp.eq.s32.totalorder %s21, 3
      %p65 = por %p63, %p64
      %p67 = scmp.ne.s32.totalorder %s50, %s66
      %p68 = scmp.eq.s32.totalorder %s21, 0
      %p69 = por %p67, %p68
      %s70 = ssub.s32 %s15, %s22
      %p71 = scmp.eq.s32.totalorder %s70, 0
      %s73 = sadd.s32 %s72, 1
      %s74 = scalar_select %p71, %s72, %s73
      %p77 = pneg %p71
      %p78 = scmp.eq.s32.totalorder %s15, 3
      %p79 = por %p77, %p78
      %p80 = scmp.ne.s32.totalorder %s72, %s75
      %p81 = scmp.eq.s32.totalorder %s15, 0
      %p82 = por %p80, %p81
      %p83 = scmp.ne.s32.totalorder %s72, %s75
      %p84 = scmp.eq.s32.totalorder %s20, 3
      %p85 = por %p83, %p84
      %p86 = scmp.ne.s32.totalorder %s75, %s76
      %p87 = scmp.eq.s32.totalorder %s20, 0
      %p88 = por %p86, %p87
      %p89 = scmp.ne.s32.totalorder %s75, %s76
      %p90 = scmp.eq.s32.totalorder %s21, 3
      %p91 = por %p89, %p90
      %p93 = scmp.ne.s32.totalorder %s76, %s92
      %p94 = scmp.eq.s32.totalorder %s21, 0
      %p95 = por %p93, %p94
      %p96 = scmp.le.s32.totalorder 1, %s15
      %p97 = scmp.lt.s32.totalorder %s15, 5
      %p98 = pnand %p96, %p97
      %p99 = pneg %p98
      // Predicated region
      $region9: #{tpu_custom_call.1} parent=5 // pred_check
        _
      $region10: #{tpu_custom_call.1} parent=5 // pred_check_branch
        %101 = sbr.rel (%p98) target = $region12
      $region11: #{tpu_custom_call.1} parent=5 // pred_region
        %s102 = ssub.s32 %s15, 1
        // Predicated region
        $region13: #{tpu_custom_call.1} parent=11 // pred_check
          %p103 = pneg %p36
        $region14: #{tpu_custom_call.1} parent=11 // pred_check_branch
          %105 = sbr.rel (%p103) target = $region16
        $region15: #{tpu_custom_call.1} parent=11 // pred_region
          %s107 = ssub.s32 16, 16
          %108 = vsyncadd [#allocation5], %s107
          %111 = dma.hbm_to_smem %s0, 16, [#allocation2], [#allocation5]
        $region16: #{tpu_custom_call.1} parent=11 // pred_fallthru
          _
      $region12: #{tpu_custom_call.1} parent=5 // pred_fallthru
        _
      %p112 = scmp.lt.s32.totalorder %s15, 4
      // Predicated region
      $region17: #{tpu_custom_call.1} parent=5 // pred_check
        %p113 = pneg %p112
      $region18: #{tpu_custom_call.1} parent=5 // pred_check_branch
        %115 = sbr.rel (%p113) target = $region20
      $region19: #{tpu_custom_call.1} parent=5 // pred_region
        // Predicated region
        $region21: #{tpu_custom_call.1} parent=19 // pred_check
          %p116 = pneg %p56
        $region22: #{tpu_custom_call.1} parent=19 // pred_check_branch
          %118 = sbr.rel (%p116) target = $region24
        $region23: #{tpu_custom_call.1} parent=19 // pred_region
          %s119 = sand.u32 %s46, 1
          %s120 = scalar_lea.sflag [#allocation3], %s119
          %s121 = sand.u32 %s46, 1
          %s122 = smul.addr %s121, 4
          %s123 = scalar_lea.vmem [#allocation6], %s122
          %s124 = smul.u32 2, %s15
          %s126 = ssub.s32 64, 64
          %127 = vsyncadd %s120, %s126
          %s128 = smul.addr %s124, 32
          %s129 = scalar_lea.hbm %s1, %s128
          %s131 = sshll.u32 %s123, 4
          %s132 = int_to_ptr.vmem [resolvable:$true] %s131
          %134 = dma.hbm_to_vmem [thread:$0]  %s129, 64, %s132, %s120
        $region24: #{tpu_custom_call.1} parent=19 // pred_fallthru
          _
      $region20: #{tpu_custom_call.1} parent=5 // pred_fallthru
        _
      %p135 = scmp.le.s32.totalorder 1, %s15
      %p136 = scmp.lt.s32.totalorder %s15, 5
      %p137 = pnand %p135, %p136
      %p138 = pneg %p137
      // Predicated region
      $region25: #{tpu_custom_call.1} parent=5 // pred_check
        _
      $region26: #{tpu_custom_call.1} parent=5 // pred_check_branch
        %140 = sbr.rel (%p137) target = $region28
      $region27: #{tpu_custom_call.1} parent=5 // pred_region
        %s141 = ssub.s32 %s15, 1
        // Predicated region
        $region29: #{tpu_custom_call.1} parent=27 // pred_check
          %p142 = pneg %p36
        $region30: #{tpu_custom_call.1} parent=27 // pred_check_branch
          %144 = sbr.rel (%p142) target = $region32
        $region31: #{tpu_custom_call.1} parent=27 // pred_region
          %145 = dma.done [#allocation5], 16
        $region32: #{tpu_custom_call.1} parent=27 // pred_fallthru
          _
        %s146 = sand.u32 %s49, 1
        %s147 = scalar_lea.sflag [#allocation3], %s146
        %s148 = sand.u32 %s49, 1
        %s149 = smul.addr %s148, 4
        %s150 = scalar_lea.vmem [#allocation6], %s149
        // Predicated region
        $region33: #{tpu_custom_call.1} parent=27 // pred_check
          %p151 = pneg %p62
        $region34: #{tpu_custom_call.1} parent=27 // pred_check_branch
          %153 = sbr.rel (%p151) target = $region36
        $region35: #{tpu_custom_call.1} parent=27 // pred_region
          %154 = dma.done %s147, 64
        $region36: #{tpu_custom_call.1} parent=27 // pred_fallthru
          _
        %155 = sfence
        %p156 = pneg %p36
        %p157 = pneg %p33
        %s158 = sand.u32 %s49, 1
        %s159 = scalar_lea.sflag [#allocation3], %s158
        %s160 = sand.u32 %s49, 1
        %s161 = smul.addr %s160, 4
        %s162 = scalar_lea.vmem [#allocation6], %s161
        %p163 = pneg %p62
        %p164 = pneg %p59
        %p165 = pneg %p88
        %p166 = pneg %p85
        %s167 = sand.u32 %s75, 1
        %s168 = scalar_lea.sflag [#allocation4], %s167
        %s169 = sand.u32 %s75, 1
        %s170 = smul.addr %s169, 2
        %s171 = scalar_lea.vmem [#allocation7], %s170
        %s172 = smul.u32 2, %s20
        %s173 = smul.u32 2, %s20
        %v174 = vld [vmem:[%s150] sm:$0xf]
        %s175 = sld [smem:[#allocation2]]
        %v176 = vstv %s175
        %v177 = vmul.f32 %v176, %v174
        %s178 = sld [smem:[#allocation2 + $0x1]]
        %v179 = vstv %s178
        %v180 = vmul.f32 %v179, %v174
        %v182 = vrot.slane %v180, 7
        %v183 = vrot.slane %v182, 2
        %v185 = vadd.f32 %v177, %v183
        %s186 = sld [smem:[#allocation2 + $0xa]]
        %v187 = vstv %s186
        %v188 = vadd.f32 %v185, %v187
        %v189 = vmul.f32 %v188, 0.5
        %v190 = vmul.f32 %v188, 0.70710677
        %v191 = verf.f32.pop %v190
        %v192 = vadd.f32 %v191, 1.0
        %v193 = vmul.f32 %v189, %v192
        %s194 = sld [smem:[#allocation2 + $0x2]]
        %v195 = vstv %s194
        %v196 = vmul.f32 %v195, %v174
        %s197 = sld [smem:[#allocation2 + $0x3]]
        %v198 = vstv %s197
        %v199 = vmul.f32 %v198, %v174
        %v201 = vrot.slane %v199, 7
        %v202 = vrot.slane %v201, 2
        %v204 = vadd.f32 %v196, %v202
        %s205 = sld [smem:[#allocation2 + $0xb]]
        %v206 = vstv %s205
        %v207 = vadd.f32 %v204, %v206
        %v208 = vmul.f32 %v207, 0.5
        %v209 = vmul.f32 %v207, 0.70710677
        %v210 = verf.f32.pop %v209
        %v211 = vadd.f32 %v210, 1.0
        %v212 = vmul.f32 %v208, %v211
        %s213 = sld [smem:[#allocation2 + $0x4]]
        %v214 = vstv %s213
        %v215 = vmul.f32 %v214, %v174
        %s216 = sld [smem:[#allocation2 + $0x5]]
        %v217 = vstv %s216
        %v218 = vmul.f32 %v217, %v174
        %v220 = vrot.slane %v218, 7
        %v221 = vrot.slane %v220, 2
        %v223 = vadd.f32 %v215, %v221
        %s224 = sld [smem:[#allocation2 + $0xc]]
        %v225 = vstv %s224
        %v226 = vadd.f32 %v223, %v225
        %v227 = vmul.f32 %v226, 0.5
        %v228 = vmul.f32 %v226, 0.70710677
        %v229 = verf.f32.pop %v228
        %v230 = vadd.f32 %v229, 1.0
        %v231 = vmul.f32 %v227, %v230
        %s232 = sld [smem:[#allocation2 + $0x6]]
        %v233 = vstv %s232
        %v234 = vmul.f32 %v233, %v174
        %s235 = sld [smem:[#allocation2 + $0x7]]
        %v236 = vstv %s235
        %v237 = vmul.f32 %v236, %v174
        %v239 = vrot.slane %v237, 7
        %v240 = vrot.slane %v239, 2
        %v242 = vadd.f32 %v234, %v240
        %s243 = sld [smem:[#allocation2 + $0xd]]
        %v244 = vstv %s243
        %v245 = vadd.f32 %v242, %v244
        %v246 = vmul.f32 %v245, 0.5
        %v247 = vmul.f32 %v245, 0.70710677
        %v248 = verf.f32.pop %v247
        %v249 = vadd.f32 %v248, 1.0
        %v250 = vmul.f32 %v246, %v249
        %s251 = sld [smem:[#allocation2 + $0x8]]
        %v252 = vstv %s251
        %v253 = vmul.f32 %v252, %v174
        %s254 = sld [smem:[#allocation2 + $0x9]]
        %v255 = vstv %s254
        %v256 = vmul.f32 %v255, %v174
        %v258 = vrot.slane %v256, 7
        %v259 = vrot.slane %v258, 2
        %v261 = vadd.f32 %v253, %v259
        %s262 = sld [smem:[#allocation2 + $0xe]]
        %v263 = vstv %s262
        %v264 = vadd.f32 %v261, %v263
        %v265 = vmul.f32 %v264, 0.5
        %v266 = vmul.f32 %v264, 0.70710677
        %v267 = verf.f32.pop %v266
        %v268 = vadd.f32 %v267, 1.0
        %v269 = vmul.f32 %v265, %v268
        %s270 = sld [smem:[#allocation2 + $0xf]]
        %v271 = vstv %s270
        %v272 = vmul.f32 %v271, %v193
        %s273 = sld [smem:[#allocation2 + $0x10]]
        %v274 = vstv %s273
        %v275 = vmul.f32 %v274, %v212
        %v276 = vadd.f32 %v272, %v275
        %s277 = sld [smem:[#allocation2 + $0x11]]
        %v278 = vstv %s277
        %v279 = vmul.f32 %v278, %v231
        %v280 = vadd.f32 %v276, %v279
        %s281 = sld [smem:[#allocation2 + $0x12]]
        %v282 = vstv %s281
        %v283 = vmul.f32 %v282, %v250
        %v284 = vadd.f32 %v280, %v283
        %s285 = sld [smem:[#allocation2 + $0x13]]
        %v286 = vstv %s285
        %v287 = vmul.f32 %v286, %v269
        %v288 = vadd.f32 %v284, %v287
        %s289 = sld [smem:[#allocation2 + $0x28]]
        %v290 = vstv %s289
        %v291 = vadd.f32 %v288, %v290
        %v292 = vmul.f32 %v291, 0.5
        %v293 = vmul.f32 %v291, 0.70710677
        %v294 = verf.f32.pop %v293
        %v295 = vadd.f32 %v294, 1.0
        %v296 = vmul.f32 %v292, %v295
        %s297 = sld [smem:[#allocation2 + $0x14]]
        %v298 = vstv %s297
        %v299 = vmul.f32 %v298, %v193
        %s300 = sld [smem:[#allocation2 + $0x15]]
        %v301 = vstv %s300
        %v302 = vmul.f32 %v301, %v212
        %v303 = vadd.f32 %v299, %v302
        %s304 = sld [smem:[#allocation2 + $0x16]]
        %v305 = vstv %s304
        %v306 = vmul.f32 %v305, %v231
        %v307 = vadd.f32 %v303, %v306
        %s308 = sld [smem:[#allocation2 + $0x17]]
        %v309 = vstv %s308
        %v310 = vmul.f32 %v309, %v250
        %v311 = vadd.f32 %v307, %v310
        %s312 = sld [smem:[#allocation2 + $0x18]]
        %v313 = vstv %s312
        %v314 = vmul.f32 %v313, %v269
        %v315 = vadd.f32 %v311, %v314
        %s316 = sld [smem:[#allocation2 + $0x29]]
        %v317 = vstv %s316
        %v318 = vadd.f32 %v315, %v317
        %v319 = vmul.f32 %v318, 0.5
        %v320 = vmul.f32 %v318, 0.70710677
        %v321 = verf.f32.pop %v320
        %v322 = vadd.f32 %v321, 1.0
        %v323 = vmul.f32 %v319, %v322
        %s324 = sld [smem:[#allocation2 + $0x19]]
        %v325 = vstv %s324
        %v326 = vmul.f32 %v325, %v193
        %s327 = sld [smem:[#allocation2 + $0x1a]]
        %v328 = vstv %s327
        %v329 = vmul.f32 %v328, %v212
        %v330 = vadd.f32 %v326, %v329
        %s331 = sld [smem:[#allocation2 + $0x1b]]
        %v332 = vstv %s331
        %v333 = vmul.f32 %v332, %v231
        %v334 = vadd.f32 %v330, %v333
        %s335 = sld [smem:[#allocation2 + $0x1c]]
        %v336 = vstv %s335
        %v337 = vmul.f32 %v336, %v250
        %v338 = vadd.f32 %v334, %v337
        %s339 = sld [smem:[#allocation2 + $0x1d]]
        %v340 = vstv %s339
        %v341 = vmul.f32 %v340, %v269
        %v342 = vadd.f32 %v338, %v341
        %s343 = sld [smem:[#allocation2 + $0x2a]]
        %v344 = vstv %s343
        %v345 = vadd.f32 %v342, %v344
        %v346 = vmul.f32 %v345, 0.5
        %v347 = vmul.f32 %v345, 0.70710677
        %v348 = verf.f32.pop %v347
        %v349 = vadd.f32 %v348, 1.0
        %v350 = vmul.f32 %v346, %v349
        %s351 = sld [smem:[#allocation2 + $0x1e]]
        %v352 = vstv %s351
        %v353 = vmul.f32 %v352, %v193
        %s354 = sld [smem:[#allocation2 + $0x1f]]
        %v355 = vstv %s354
        %v356 = vmul.f32 %v355, %v212
        %v357 = vadd.f32 %v353, %v356
        %s358 = sld [smem:[#allocation2 + $0x20]]
        %v359 = vstv %s358
        %v360 = vmul.f32 %v359, %v231
        %v361 = vadd.f32 %v357, %v360
        %s362 = sld [smem:[#allocation2 + $0x21]]
        %v363 = vstv %s362
        %v364 = vmul.f32 %v363, %v250
        %v365 = vadd.f32 %v361, %v364
        %s366 = sld [smem:[#allocation2 + $0x22]]
        %v367 = vstv %s366
        %v368 = vmul.f32 %v367, %v269
        %v369 = vadd.f32 %v365, %v368
        %s370 = sld [smem:[#allocation2 + $0x2b]]
        %v371 = vstv %s370
        %v372 = vadd.f32 %v369, %v371
        %v373 = vmul.f32 %v372, 0.5
        %v374 = vmul.f32 %v372, 0.70710677
        %v375 = verf.f32.pop %v374
        %v376 = vadd.f32 %v375, 1.0
        %v377 = vmul.f32 %v373, %v376
        %s378 = sld [smem:[#allocation2 + $0x23]]
        %v379 = vstv %s378
        %v380 = vmul.f32 %v379, %v193
        %s381 = sld [smem:[#allocation2 + $0x24]]
        %v382 = vstv %s381
        %v383 = vmul.f32 %v382, %v212
        %v384 = vadd.f32 %v380, %v383
        %s385 = sld [smem:[#allocation2 + $0x25]]
        %v386 = vstv %s385
        %v387 = vmul.f32 %v386, %v231
        %v388 = vadd.f32 %v384, %v387
        %s389 = sld [smem:[#allocation2 + $0x26]]
        %v390 = vstv %s389
        %v391 = vmul.f32 %v390, %v250
        %v392 = vadd.f32 %v388, %v391
        %s393 = sld [smem:[#allocation2 + $0x27]]
        %v394 = vstv %s393
        %v395 = vmul.f32 %v394, %v269
        %v396 = vadd.f32 %v392, %v395
        %s397 = sld [smem:[#allocation2 + $0x2c]]
        %v398 = vstv %s397
        %v399 = vadd.f32 %v396, %v398
        %v400 = vmul.f32 %v399, 0.5
        %v401 = vmul.f32 %v399, 0.70710677
        %v402 = verf.f32.pop %v401
        %v403 = vadd.f32 %v402, 1.0
        %v404 = vmul.f32 %v400, %v403
        %s405 = sld [smem:[#allocation2 + $0x2d]]
        %v406 = vstv %s405
        %v407 = vmul.f32 %v406, %v296
        %s408 = sld [smem:[#allocation2 + $0x2e]]
        %v409 = vstv %s408
        %v410 = vmul.f32 %v409, %v323
        %v411 = vadd.f32 %v407, %v410
        %s412 = sld [smem:[#allocation2 + $0x2f]]
        %v413 = vstv %s412
        %v414 = vmul.f32 %v413, %v350
        %v415 = vadd.f32 %v411, %v414
        %s416 = sld [smem:[#allocation2 + $0x30]]
        %v417 = vstv %s416
        %v418 = vmul.f32 %v417, %v377
        %v419 = vadd.f32 %v415, %v418
        %s420 = sld [smem:[#allocation2 + $0x31]]
        %v421 = vstv %s420
        %v422 = vmul.f32 %v421, %v404
        %v423 = vadd.f32 %v419, %v422
        %s424 = sld [smem:[#allocation2 + $0x46]]
        %v425 = vstv %s424
        %v426 = vadd.f32 %v423, %v425
        %v427 = vmul.f32 %v426, 0.5
        %v428 = vmul.f32 %v426, 0.70710677
        %v429 = verf.f32.pop %v428
        %v430 = vadd.f32 %v429, 1.0
        %v431 = vmul.f32 %v427, %v430
        %s432 = sld [smem:[#allocation2 + $0x32]]
        %v433 = vstv %s432
        %v434 = vmul.f32 %v433, %v296
        %s435 = sld [smem:[#allocation2 + $0x33]]
        %v436 = vstv %s435
        %v437 = vmul.f32 %v436, %v323
        %v438 = vadd.f32 %v434, %v437
        %s439 = sld [smem:[#allocation2 + $0x34]]
        %v440 = vstv %s439
        %v441 = vmul.f32 %v440, %v350
        %v442 = vadd.f32 %v438, %v441
        %s443 = sld [smem:[#allocation2 + $0x35]]
        %v444 = vstv %s443
        %v445 = vmul.f32 %v444, %v377
        %v446 = vadd.f32 %v442, %v445
        %s447 = sld [smem:[#allocation2 + $0x36]]
        %v448 = vstv %s447
        %v449 = vmul.f32 %v448, %v404
        %v450 = vadd.f32 %v446, %v449
        %s451 = sld [smem:[#allocation2 + $0x47]]
        %v452 = vstv %s451
        %v453 = vadd.f32 %v450, %v452
        %v454 = vmul.f32 %v453, 0.5
        %v455 = vmul.f32 %v453, 0.70710677
        %v456 = verf.f32.pop %v455
        %v457 = vadd.f32 %v456, 1.0
        %v458 = vmul.f32 %v454, %v457
        %s459 = sld [smem:[#allocation2 + $0x37]]
        %v460 = vstv %s459
        %v461 = vmul.f32 %v460, %v296
        %s462 = sld [smem:[#allocation2 + $0x38]]
        %v463 = vstv %s462
        %v464 = vmul.f32 %v463, %v323
        %v465 = vadd.f32 %v461, %v464
        %s466 = sld [smem:[#allocation2 + $0x39]]
        %v467 = vstv %s466
        %v468 = vmul.f32 %v467, %v350
        %v469 = vadd.f32 %v465, %v468
        %s470 = sld [smem:[#allocation2 + $0x3a]]
        %v471 = vstv %s470
        %v472 = vmul.f32 %v471, %v377
        %v473 = vadd.f32 %v469, %v472
        %s474 = sld [smem:[#allocation2 + $0x3b]]
        %v475 = vstv %s474
        %v476 = vmul.f32 %v475, %v404
        %v477 = vadd.f32 %v473, %v476
        %s478 = sld [smem:[#allocation2 + $0x48]]
        %v479 = vstv %s478
        %v480 = vadd.f32 %v477, %v479
        %v481 = vmul.f32 %v480, 0.5
        %v482 = vmul.f32 %v480, 0.70710677
        %v483 = verf.f32.pop %v482
        %v484 = vadd.f32 %v483, 1.0
        %v485 = vmul.f32 %v481, %v484
        %s486 = sld [smem:[#allocation2 + $0x3c]]
        %v487 = vstv %s486
        %v488 = vmul.f32 %v487, %v296
        %s489 = sld [smem:[#allocation2 + $0x3d]]
        %v490 = vstv %s489
        %v491 = vmul.f32 %v490, %v323
        %v492 = vadd.f32 %v488, %v491
        %s493 = sld [smem:[#allocation2 + $0x3e]]
        %v494 = vstv %s493
        %v495 = vmul.f32 %v494, %v350
        %v496 = vadd.f32 %v492, %v495
        %s497 = sld [smem:[#allocation2 + $0x3f]]
        %v498 = vstv %s497
        %v499 = vmul.f32 %v498, %v377
        %v500 = vadd.f32 %v496, %v499
        %s501 = sld [smem:[#allocation2 + $0x40]]
        %v502 = vstv %s501
        %v503 = vmul.f32 %v502, %v404
        %v504 = vadd.f32 %v500, %v503
        %s505 = sld [smem:[#allocation2 + $0x49]]
        %v506 = vstv %s505
        %v507 = vadd.f32 %v504, %v506
        %v508 = vmul.f32 %v507, 0.5
        %v509 = vmul.f32 %v507, 0.70710677
        %v510 = verf.f32.pop %v509
        %v511 = vadd.f32 %v510, 1.0
        %v512 = vmul.f32 %v508, %v511
        %s513 = sld [smem:[#allocation2 + $0x41]]
        %v514 = vstv %s513
        %v515 = vmul.f32 %v514, %v296
        %s516 = sld [smem:[#allocation2 + $0x42]]
        %v517 = vstv %s516
        %v518 = vmul.f32 %v517, %v323
        %v519 = vadd.f32 %v515, %v518
        %s520 = sld [smem:[#allocation2 + $0x43]]
        %v521 = vstv %s520
        %v522 = vmul.f32 %v521, %v350
        %v523 = vadd.f32 %v519, %v522
        %s524 = sld [smem:[#allocation2 + $0x44]]
        %v525 = vstv %s524
        %v526 = vmul.f32 %v525, %v377
        %v527 = vadd.f32 %v523, %v526
        %s528 = sld [smem:[#allocation2 + $0x45]]
        %v529 = vstv %s528
        %v530 = vmul.f32 %v529, %v404
        %v531 = vadd.f32 %v527, %v530
        %s532 = sld [smem:[#allocation2 + $0x4a]]
        %v533 = vstv %s532
        %v534 = vadd.f32 %v531, %v533
        %v535 = vmul.f32 %v534, 0.5
        %v536 = vmul.f32 %v534, 0.70710677
        %v537 = verf.f32.pop %v536
        %v538 = vadd.f32 %v537, 1.0
        %v539 = vmul.f32 %v535, %v538
        %s540 = sld [smem:[#allocation2 + $0x4b]]
        %v541 = vstv %s540
        %v542 = vmul.f32 %v541, %v431
        %s543 = sld [smem:[#allocation2 + $0x4c]]
        %v544 = vstv %s543
        %v545 = vmul.f32 %v544, %v458
        %v546 = vadd.f32 %v542, %v545
        %s547 = sld [smem:[#allocation2 + $0x4d]]
        %v548 = vstv %s547
        %v549 = vmul.f32 %v548, %v485
        %v550 = vadd.f32 %v546, %v549
        %s551 = sld [smem:[#allocation2 + $0x4e]]
        %v552 = vstv %s551
        %v553 = vmul.f32 %v552, %v512
        %v554 = vadd.f32 %v550, %v553
        %s555 = sld [smem:[#allocation2 + $0x4f]]
        %v556 = vstv %s555
        %v557 = vmul.f32 %v556, %v539
        %v558 = vadd.f32 %v554, %v557
        %s559 = sld [smem:[#allocation2 + $0x50]]
        %v560 = vstv %s559
        %v561 = vadd.f32 %v558, %v560
        %v564 = vunpack.c.l.s4 1966171168
        %v565 = vunpack.c.0.s8 %v564
        %v566 = vlaneseq
        %v567 = vshrl.u32 %v566, 7
        %v568 = vsub.s32 %v565, %v567
        %v569 = vrot.slane %v561, %v568
        %v571 = vlaneseq
        %vm572 = vcmp.ge.s32.totalorder %v571, 0
        %vm573 = vcmp.lt.s32.totalorder %v571, 256
        %vm574 = vmand %vm572, %vm573
        %575 = vst.msk [vmem:[%s171] sm:$0x3] %vm574, %v569
        %s576 = sand.u32 %s75, 1
        %s577 = scalar_lea.sflag [#allocation4], %s576
        %s578 = sand.u32 %s75, 1
        %s579 = smul.addr %s578, 2
        %s580 = scalar_lea.vmem [#allocation7], %s579
        // Predicated region
        $region37: #{tpu_custom_call.1} parent=27 // pred_check
          %p581 = pneg %p85
        $region38: #{tpu_custom_call.1} parent=27 // pred_check_branch
          %583 = sbr.rel (%p581) target = $region40
        $region39: #{tpu_custom_call.1} parent=27 // pred_region
          %s584 = smul.u32 2, %s20
          %s586 = ssub.s32 32, 32
          %587 = vsyncadd %s577, %s586
          %s588 = smul.addr %s584, 16
          %s589 = scalar_lea.hbm %s2, %s588
          %s591 = sshll.u32 %s580, 4
          %s592 = int_to_ptr.vmem [resolvable:$true] %s591
          %594 = dma.vmem_to_hbm [thread:$0]  %s592, 32, %s589, %s577
        $region40: #{tpu_custom_call.1} parent=27 // pred_fallthru
          _
      $region28: #{tpu_custom_call.1} parent=5 // pred_fallthru
        _
      %p595 = scmp.le.s32.totalorder 2, %s15
      // Predicated region
      $region41: #{tpu_custom_call.1} parent=5 // pred_check
        %p596 = pneg %p595
      $region42: #{tpu_custom_call.1} parent=5 // pred_check_branch
        %598 = sbr.rel (%p596) target = $region44
      $region43: #{tpu_custom_call.1} parent=5 // pred_region
        %s599 = ssub.s32 %s15, 2
        // Predicated region
        $region45: #{tpu_custom_call.1} parent=43 // pred_check
          %p600 = pneg %p91
        $region46: #{tpu_custom_call.1} parent=43 // pred_check_branch
          %602 = sbr.rel (%p600) target = $region48
        $region47: #{tpu_custom_call.1} parent=43 // pred_region
          %s603 = sand.u32 %s76, 1
          %s604 = scalar_lea.sflag [#allocation4], %s603
          %s605 = sand.u32 %s76, 1
          %s606 = smul.addr %s605, 2
          %s607 = scalar_lea.vmem [#allocation7], %s606
          %608 = dma.done %s604, 32
        $region48: #{tpu_custom_call.1} parent=43 // pred_fallthru
          _
      $region44: #{tpu_custom_call.1} parent=5 // pred_fallthru
        _
    $region6: #{tpu_custom_call.1} parent=1 // loop_footer
      %s19 = sadd.s32 1, %s15
    $region7: #{tpu_custom_call.1} parent=1 // loop_footer_branch
      %14 = sbr.rel target = $region3
    $region8: #{tpu_custom_call.1} parent=1 // loop_exit
      _
    %609 = vsyncpa [#allocation3], 1
    %s610 = scalar_lea.sflag [#allocation3], 1
    %611 = vsyncpa %s610, 1
    %612 = vsyncpa [#allocation4], 1
    %s613 = scalar_lea.sflag [#allocation4], 1
    %614 = vsyncpa %s613, 1
    %615 = vsyncpa [#allocation5], 1
    %s616 = scalar_lea.sflag [#allocation5], 1
    %617 = vsyncpa %s616, 1

</llo_original>
